<compile_context>
chip_gen: v7x
topology: tpu7x:2x2x1
jax: 0.10.0
libtpu: 0.0.40
codegen_flags: <defaults>
</compile_context>

<pallas_src>
import jax
import jax.numpy as jnp
from jax.experimental import pallas as pl
from jax.experimental.pallas import tpu as pltpu


def _dummy_pretrained_kernel(xt_ref, w_ref, b_ref, o_ref):
    # xt_ref: (4, TM)  VMEM  input tile, batch on the 128-lane axis
    # w_ref : (1, 4)   SMEM  fused weight row (w2 @ w1), read as 4 scalars
    # b_ref : (1, 1)   SMEM  fc bias scalar
    # o_ref : (1, TM)  VMEM  lane-dense output tile
    x = xt_ref[...].astype(jnp.float32)  # upcast (if bf16/f16 input) on the VPU
    # y[0, b] = sum_k w_eff[k] * x[k, b] + bias  -- 4 vmul + 4 vadd per 128 outputs, no MXU.
    y = (w_ref[0, 0] * x[0:1, :]
         + w_ref[0, 1] * x[1:2, :]
         + w_ref[0, 2] * x[2:3, :]
         + w_ref[0, 3] * x[3:4, :]
         + b_ref[0, 0])
    o_ref[...] = y


def _round_up(n, m):
    return ((n + m - 1) // m) * m


def dummy_pretrained_model_t(x_t, w1, w2, b2, *, tm_max=4096):
    """Lane-dense entry point.

    x_t: (4, B) inputs (batch on the minor axis); w1: (2, 4); w2: (1, 2); b2: (1,).
    Returns (1, B) float32.
    """
    K, B = x_t.shape
    assert K == 4, x_t.shape

    # Fuse both linears: y = x @ w1.T @ w2.T + b2 == (w2 @ w1) applied to x, + b2.
    # (Weights-only precompute; constant-foldable under jit.)
    w_eff = (w2.astype(jnp.float32) @ w1.astype(jnp.float32)).reshape(1, 4)  # (1, 4)
    b2_2d = b2.reshape(1, 1).astype(jnp.float32)                             # (1, 1)

    # Tile selection: large, 128-aligned tiles to amortize the ~0.35 us/step overhead,
    # but at least 2 grid steps when B is large so v7x megacore sharding has work to split.
    if B <= 128:
        tm = B                                            # full extent (single step)
    else:
        tm = min(_round_up(tm_max, 128),
                 _round_up(pl.cdiv(B, 2), 128))
    grid = (pl.cdiv(B, tm),)

    itemsize = jnp.dtype(x_t.dtype).itemsize
    out = pl.pallas_call(
        _dummy_pretrained_kernel,
        out_shape=jax.ShapeDtypeStruct((1, B), jnp.float32),
        grid=grid,
        in_specs=[
            # Input tile: batch on lanes, 4-wide feature dim on sublanes (full extent).
            pl.BlockSpec((4, tm), lambda i: (0, i)),
            # Fused weights + bias: a few bytes in SMEM, replicated across the grid.
            pl.BlockSpec((1, 4), lambda i: (0, 0),
                         memory_space=pltpu.MemorySpace.SMEM),
            pl.BlockSpec((1, 1), lambda i: (0, 0),
                         memory_space=pltpu.MemorySpace.SMEM),
        ],
        # Lane-dense output block (batch on lanes): unmasked full-lane stores when tiled.
        out_specs=pl.BlockSpec((1, tm), lambda i: (0, i)),
        compiler_params=pltpu.CompilerParams(
            dimension_semantics=("parallel",),
        ),
        cost_estimate=pl.CostEstimate(
            flops=9 * B,                                   # 4 mul + 4 add (+bias) per output
            bytes_accessed=B * (4 * itemsize + 4) + 32,    # x read + f32 out + params
            transcendentals=0,
        ),
    )(x_t, w_eff, b2_2d)
    return out


def dummy_pretrained_model(x, w1, w2, b2, *, tm_max=4096):
    """Module-shaped entry point: x (B, 4) -> (B, 1) float32, matching the PyTorch forward."""
    B = x.shape[0]
    # One-time relayout so the kernel streams batch on the lane axis. Callers that can
    # already provide (4, B) and consume (1, B) should use dummy_pretrained_model_t to
    # avoid both lane-padded relayouts.
    x_t = jnp.transpose(x)                                  # (4, B)
    out = dummy_pretrained_model_t(x_t, w1, w2, b2, tm_max=tm_max)
    return out.reshape(B, 1)                                # module contract: (B, 1)


if __name__ == "__main__":
    key = jax.random.PRNGKey(0)
    k_x, k_w1, k_w2, k_b2 = jax.random.split(key, 4)

    B = 8
    x = jax.random.normal(k_x, (B, 4), dtype=jnp.float32)

    # Deterministic parameter init (shapes from the module's __init__):
    #   features: Linear(4, 2, bias=False) -> weight (2, 4)
    #   fc:       Linear(2, 1)             -> weight (1, 2), bias (1,)
    w1 = jax.random.uniform(k_w1, (2, 4), dtype=jnp.float32, minval=-0.5, maxval=0.5)
    w2 = jax.random.uniform(k_w2, (1, 2), dtype=jnp.float32, minval=-0.7, maxval=0.7)
    b2 = jax.random.uniform(k_b2, (1,), dtype=jnp.float32, minval=-0.7, maxval=0.7)

    out = dummy_pretrained_model(x, w1, w2, b2)
    out = jax.block_until_ready(out)

    # Pure-JAX reference of the unfused module math.
    ref = (x @ w1.T) @ w2.T + b2
    assert out.shape == (B, 1), out.shape
    assert jnp.allclose(out, ref, atol=1e-5, rtol=1e-5), (out, ref)

    # Also exercise the tiled multi-step-grid path (B not a multiple of the tile).
    B2 = 1000
    x2 = jax.random.normal(k_x, (B2, 4), dtype=jnp.float32)
    out2 = jax.block_until_ready(dummy_pretrained_model(x2, w1, w2, b2))
    ref2 = (x2 @ w1.T) @ w2.T + b2
    assert out2.shape == (B2, 1), out2.shape
    assert jnp.allclose(out2, ref2, atol=1e-4, rtol=1e-4)

    print("KERNEL_OK")
</pallas_src>

<mosaic_0001>
module attributes {stable_mosaic.version = 11 : i64} {
  func.func @_dummy_pretrained_kernel(%arg0: i32, %arg1: memref<4x8xf32, #tpu.memory_space<vmem>>, %arg2: memref<1x4xf32, #tpu.memory_space<smem>>, %arg3: memref<1x1xf32, #tpu.memory_space<smem>>, %arg4: memref<1x8xf32, #tpu.memory_space<vmem>>) attributes {dimension_semantics = [#tpu.dimension_semantics<parallel>], iteration_bounds = array<i64: 1>, scalar_prefetch = 0 : i64, scratch_operands = 0 : i64, tpu.core_type = #tpu.core_type<tc>, window_params = [{transform_indices = @transform_0, window_bounds = array<i64: 4, 8>}, {transform_indices = @transform_1, window_bounds = array<i64: 1, 4>}, {transform_indices = @transform_2, window_bounds = array<i64: 1, 1>}, {transform_indices = @transform_3, window_bounds = array<i64: 1, 8>}]} {
    %c0 = arith.constant 0 : index
    %c0_0 = arith.constant 0 : index
    %0 = vector.load %arg1[%c0, %c0_0] : memref<4x8xf32, #tpu.memory_space<vmem>>, vector<4x8xf32>
    %c0_1 = arith.constant 0 : index
    %c0_2 = arith.constant 0 : index
    %1 = memref.load %arg2[%c0_1, %c0_2] : memref<1x4xf32, #tpu.memory_space<smem>>
    %2 = vector.extract_strided_slice %0 {offsets = [0, 0], sizes = [1, 8], strides = [1, 1]} : vector<4x8xf32> to vector<1x8xf32>
    %3 = vector.broadcast %1 : f32 to vector<1x8xf32>
    %4 = arith.mulf %3, %2 : vector<1x8xf32>
    %c0_3 = arith.constant 0 : index
    %c1 = arith.constant 1 : index
    %5 = memref.load %arg2[%c0_3, %c1] : memref<1x4xf32, #tpu.memory_space<smem>>
    %6 = vector.extract_strided_slice %0 {offsets = [1, 0], sizes = [1, 8], strides = [1, 1]} : vector<4x8xf32> to vector<1x8xf32>
    %7 = vector.broadcast %5 : f32 to vector<1x8xf32>
    %8 = arith.mulf %7, %6 : vector<1x8xf32>
    %9 = arith.addf %4, %8 : vector<1x8xf32>
    %c0_4 = arith.constant 0 : index
    %c2 = arith.constant 2 : index
    %10 = memref.load %arg2[%c0_4, %c2] : memref<1x4xf32, #tpu.memory_space<smem>>
    %11 = vector.extract_strided_slice %0 {offsets = [2, 0], sizes = [1, 8], strides = [1, 1]} : vector<4x8xf32> to vector<1x8xf32>
    %12 = vector.broadcast %10 : f32 to vector<1x8xf32>
    %13 = arith.mulf %12, %11 : vector<1x8xf32>
    %14 = arith.addf %9, %13 : vector<1x8xf32>
    %c0_5 = arith.constant 0 : index
    %c3 = arith.constant 3 : index
    %15 = memref.load %arg2[%c0_5, %c3] : memref<1x4xf32, #tpu.memory_space<smem>>
    %16 = vector.extract_strided_slice %0 {offsets = [3, 0], sizes = [1, 8], strides = [1, 1]} : vector<4x8xf32> to vector<1x8xf32>
    %17 = vector.broadcast %15 : f32 to vector<1x8xf32>
    %18 = arith.mulf %17, %16 : vector<1x8xf32>
    %19 = arith.addf %14, %18 : vector<1x8xf32>
    %c0_6 = arith.constant 0 : index
    %c0_7 = arith.constant 0 : index
    %20 = memref.load %arg3[%c0_6, %c0_7] : memref<1x1xf32, #tpu.memory_space<smem>>
    %21 = vector.broadcast %20 : f32 to vector<1x8xf32>
    %22 = arith.addf %19, %21 : vector<1x8xf32>
    %c0_8 = arith.constant 0 : index
    %c0_9 = arith.constant 0 : index
    %23 = vector.load %arg4[%c0_8, %c0_9] : memref<1x8xf32, #tpu.memory_space<vmem>>, vector<1x8xf32>
    tpu.vector_store %arg4[%c0_8, %c0_9], %22 {strides = array<i32>} : memref<1x8xf32, #tpu.memory_space<vmem>>, vector<1x8xf32>,
    return
  }
  func.func @transform_0(%arg0: i32) -> (i32, i32) {
    %c0_i32 = arith.constant 0 : i32
    %c0_i32_0 = arith.constant 0 : i32
    return %c0_i32, %arg0 : i32, i32
  }
  func.func @transform_1(%arg0: i32) -> (i32, i32) {
    %c0_i32 = arith.constant 0 : i32
    %c0_i32_0 = arith.constant 0 : i32
    %c0_i32_1 = arith.constant 0 : i32
    return %c0_i32, %c0_i32_0 : i32, i32
  }
  func.func @transform_2(%arg0: i32) -> (i32, i32) {
    %c0_i32 = arith.constant 0 : i32
    %c0_i32_0 = arith.constant 0 : i32
    %c0_i32_1 = arith.constant 0 : i32
    return %c0_i32, %c0_i32_0 : i32, i32
  }
  func.func @transform_3(%arg0: i32) -> (i32, i32) {
    %c0_i32 = arith.constant 0 : i32
    %c0_i32_0 = arith.constant 0 : i32
    return %c0_i32, %arg0 : i32, i32
  }
}

</mosaic_0001>

<llo_original>
// kernel: tpu_custom_call.1
$region0: #{tpu_custom_call.1}
  #allocation0 [shape = 'u32[]', space=smem, size = 0x4, offset = 0x4, fixed_abs, tag = 'smem constant byte address 0x4 - core index']
  #allocation1 [shape = 'u32[144,128]{1,0:T(1,128)}', space=vmem, size = 0x12000, scoped, tag = 'internal scratch']
  #allocation2 [shape = 'f32[1,1]{1,0:T(1,128)S(6)}', space=smem, size = 0x200, scoped, tag = 'scoped memory for tpu_custom_call.1']
  %s0 = inlined_call_operand.hbm [shape: f32[4,8], index: 0, kind: input, shape index: {}]
  %s1 = inlined_call_operand.vmem [shape: f32[1,4], index: 1, kind: input, shape index: {}]
  %s2 = inlined_call_operand.<no memory space> [shape: f32[1,1], index: 2, kind: input, shape index: {}]
  %s3 = inlined_call_operand.hbm [shape: f32[1,8], index: 3, kind: output, shape index: {}]
  %s4 = sld [smem:[#allocation0]]
  $region30: #{tpu_custom_call.1} parent=0
    _
  %s6 = ssub.s32 1, %s4
  %s7 = scalar_select 0, %s6, %s4
  %8 = sst [smem:[#allocation2]] %s2
  $region1: #{tpu_custom_call.1} parent=0
    #allocation3 [shape = 'u8[2048]{0}', space=vmem, size = 0x800, scoped, tag = 'input window, operand 0, single buffered']
    #allocation4 [shape = 's32[1]{0}', space=sflag, size = 0x4, scoped, tag = 'scoped memory for tpu_custom_call.1']
    #allocation5 [shape = 's32[1]{0}', space=sflag, size = 0x4, scoped, tag = 'scoped memory for tpu_custom_call.1']
    #allocation6 [shape = 's32[1]{0}', space=sflag, size = 0x4, scoped, tag = 'scoped memory for tpu_custom_call.1']
    #allocation7 [shape = 'u8[512]{0}', space=smem, size = 0x200, scoped, tag = 'input window, operand 1, single buffered']
    #allocation8 [shape = 'u8[512]{0}', space=vmem, size = 0x400, scoped, tag = 'output window, operand 0, single buffered']
    %9 = vsyncpa [#allocation4], 0
    %10 = vsyncpa [#allocation6], 0
    %11 = vsyncpa [#allocation5], 0
    // Predicated region
    $region2: #{tpu_custom_call.1} parent=1 // pred_check
      _
    $region3: #{tpu_custom_call.1} parent=1 // pred_check_branch
      %13 = sbr.rel (0) target = $region5
    $region4: #{tpu_custom_call.1} parent=1 // pred_region
      %s15 = ssub.s32 64, 64
      %16 = vsyncadd [#allocation4], %s15
      %s18 = sshll.u32 [#allocation3], 4
      %s19 = int_to_ptr.vmem [resolvable:$true] %s18
      %21 = dma.hbm_to_vmem [thread:$0]  %s0, 64, %s19, [#allocation4]
    $region5: #{tpu_custom_call.1} parent=1 // pred_fallthru
      _
    // Predicated region
    $region6: #{tpu_custom_call.1} parent=1 // pred_check
      _
    $region7: #{tpu_custom_call.1} parent=1 // pred_check_branch
      %23 = sbr.rel (0) target = $region9
    $region8: #{tpu_custom_call.1} parent=1 // pred_region
      %s25 = ssub.s32 16, 16
      %26 = vsyncadd [#allocation6], %s25
      %s28 = sshll.u32 %s1, 4
      %s29 = int_to_ptr.vmem [resolvable:$true] %s28
      %31 = dma.vmem_to_smem %s29, 16, [#allocation7], [#allocation6]
    $region9: #{tpu_custom_call.1} parent=1 // pred_fallthru
      _
    // Predicated region
    $region10: #{tpu_custom_call.1} parent=1 // pred_check
      _
    $region11: #{tpu_custom_call.1} parent=1 // pred_check_branch
      %33 = sbr.rel (0) target = $region13
    $region12: #{tpu_custom_call.1} parent=1 // pred_region
      _
    $region13: #{tpu_custom_call.1} parent=1 // pred_fallthru
      _
    // Predicated region
    $region14: #{tpu_custom_call.1} parent=1 // pred_check
      _
    $region15: #{tpu_custom_call.1} parent=1 // pred_check_branch
      %35 = sbr.rel (0) target = $region17
    $region16: #{tpu_custom_call.1} parent=1 // pred_region
      %36 = dma.done [#allocation4], 64
    $region17: #{tpu_custom_call.1} parent=1 // pred_fallthru
      _
    // Predicated region
    $region18: #{tpu_custom_call.1} parent=1 // pred_check
      _
    $region19: #{tpu_custom_call.1} parent=1 // pred_check_branch
      %38 = sbr.rel (0) target = $region21
    $region20: #{tpu_custom_call.1} parent=1 // pred_region
      %39 = dma.done [#allocation6], 16
    $region21: #{tpu_custom_call.1} parent=1 // pred_fallthru
      _
    %40 = sfence
    %v41 = vld [vmem:[#allocation3] sm:$0xf]
    %s42 = sld [smem:[#allocation7]]
    %v43 = vstv %s42
    %v44 = vmul.f32 %v43, %v41
    %s45 = sld [smem:[#allocation7 + $0x1]]
    %v46 = vstv %s45
    %v47 = vmul.f32 %v46, %v41
    %v49 = vrot.slane %v47, 1
    %v51 = vadd.f32 %v44, %v49
    %s52 = sld [smem:[#allocation7 + $0x2]]
    %v53 = vstv %s52
    %v54 = vmul.f32 %v53, %v41
    %v56 = vrot.slane %v54, 2
    %v58 = vadd.f32 %v51, %v56
    %s59 = sld [smem:[#allocation7 + $0x3]]
    %v60 = vstv %s59
    %v61 = vmul.f32 %v60, %v41
    %v63 = vrot.slane %v61, 3
    %v65 = vadd.f32 %v58, %v63
    %s66 = sld [smem:[#allocation2]]
    %v67 = vstv %s66
    %v68 = vadd.f32 %v65, %v67
    %vm69 = vcmask 57344
    %70 = vst.msk [vmem:[#allocation8] sm:$0x1] %vm69, %v68
    // Predicated region
    $region22: #{tpu_custom_call.1} parent=1 // pred_check
      _
    $region23: #{tpu_custom_call.1} parent=1 // pred_check_branch
      %72 = sbr.rel (0) target = $region25
    $region24: #{tpu_custom_call.1} parent=1 // pred_region
      %s74 = ssub.s32 16, 16
      %75 = vsyncadd [#allocation5], %s74
      %s77 = sshll.u32 [#allocation8], 4
      %s78 = int_to_ptr.vmem [resolvable:$true] %s77
      %80 = dma.vmem_to_hbm [thread:$0]  %s78, 16, %s3, [#allocation5]
    $region25: #{tpu_custom_call.1} parent=1 // pred_fallthru
      _
    // Predicated region
    $region26: #{tpu_custom_call.1} parent=1 // pred_check
      _
    $region27: #{tpu_custom_call.1} parent=1 // pred_check_branch
      %82 = sbr.rel (0) target = $region29
    $region28: #{tpu_custom_call.1} parent=1 // pred_region
      %83 = dma.done [#allocation5], 16
    $region29: #{tpu_custom_call.1} parent=1 // pred_fallthru
      _
    %84 = vsyncpa [#allocation4], 1
    %85 = vsyncpa [#allocation5], 1
    %86 = vsyncpa [#allocation6], 1

</llo_original>
